<compile_context>
chip_gen: v5e
topology: v5e:2x2
jax: 0.10.0
libtpu: 0.0.40
codegen_flags: <defaults>
</compile_context>

<pallas_src>
import functools

import jax
import jax.numpy as jnp
from jax.experimental import pallas as pl
from jax.experimental.pallas import tpu as pltpu

EPS = 1e-5  # nn.InstanceNorm2d default


def _conv_block_kernel(x_ref, w1_ref, b1_ref, w2_ref, b2_ref, a_ref,
                       o_ref, sum_ref, ssq_ref, m0_ref, *ycache,
                       hw_total, t_hw, cache_y):
    # x_ref : (1, Cin, T)     channel-major HW tile of one image
    # w1_ref: (Cout, Cin)     first 1x1 conv weight (PyTorch layout)
    # b1_ref: (Cout, 1)
    # w2_ref: (Cout, Cout)
    # b2_ref: (Cout, 1)
    # a_ref : (1, 1)  SMEM    shared PReLU slope (nn.PReLU() default: 1 param)
    # o_ref : (1, Cout, T)
    # sum_ref/ssq_ref/m0_ref : (Cout, 1) f32 scratch (per-image stats / consts)
    # ycache: optional (Cout, HW) f32 scratch holding y = conv1(x) + b1
    p = pl.program_id(1)   # 0 = stats pass, 1 = normalize + conv2 pass
    t = pl.program_id(2)   # HW tile index

    if t_hw % 128 == 0:
        off = pl.multiple_of(t * t_hw, 128)
    else:
        off = t * t_hw

    @pl.when(p == 0)
    def _pass0():
        # 1x1 conv #1: (Cout, Cin) @ (Cin, T) on the MXU, f32 accumulation.
        y = jnp.dot(w1_ref[...], x_ref[0], preferred_element_type=jnp.float32)
        y = y + b1_ref[...]                                  # (Cout, T)
        if cache_y:
            ycache[0][:, pl.ds(off, t_hw)] = y

        @pl.when(t == 0)
        def _init():
            # Per-channel shift = first-tile mean -> numerically stable stats.
            m0_ref[...] = jnp.sum(y, axis=-1, keepdims=True) * (1.0 / float(t_hw))
            sum_ref[...] = jnp.zeros_like(sum_ref)
            ssq_ref[...] = jnp.zeros_like(ssq_ref)

        d = y - m0_ref[...]
        sum_ref[...] += jnp.sum(d, axis=-1, keepdims=True)
        ssq_ref[...] += jnp.sum(d * d, axis=-1, keepdims=True)

    @pl.when(p == 1)
    def _pass1():
        @pl.when(t == 0)
        def _finalize():
            # Compute per-image mean / rsqrt(var+eps) ONCE, reuse for all tiles.
            inv_hw = 1.0 / float(hw_total)
            dmean = sum_ref[...] * inv_hw
            var = jnp.maximum(ssq_ref[...] * inv_hw - dmean * dmean, 0.0)
            sum_ref[...] = m0_ref[...] + dmean               # mean
            ssq_ref[...] = jax.lax.rsqrt(var + EPS)          # 1/sqrt(var+eps)

        if cache_y:
            y = ycache[0][:, pl.ds(off, t_hw)]               # single x read overall
        else:
            y = jnp.dot(w1_ref[...], x_ref[0], preferred_element_type=jnp.float32)
            y = y + b1_ref[...]

        # InstanceNorm2d (biased variance, no affine) + ReLU
        yn = jnp.maximum((y - sum_ref[...]) * ssq_ref[...], 0.0)
        # 1x1 conv #2
        z = jnp.dot(w2_ref[...], yn, preferred_element_type=jnp.float32)
        z = z + b2_ref[...]                                  # (Cout, T)
        # PReLU (single shared slope, nn.PReLU() default)
        a = a_ref[0, 0]
        o_ref[0] = jnp.where(z >= 0.0, z, a * z).astype(o_ref.dtype)


def _vmem_capacity_bytes():
    try:
        return int(pltpu.get_tpu_info().vmem_capacity_bytes)
    except Exception:
        return 64 * 2**20   # conservative (v7x-sized) fallback


def conv_block(x_nchw, w1, b1, w2, b2, prelu_a, *, hw_tile=None, cache_y=None):
    """ConvBlock forward.  x_nchw: (N, Cin, H, W); w1: (Cout, Cin); w2: (Cout, Cout)."""
    N, Cin, H, W = x_nchw.shape
    Cout = w1.shape[0]
    HW = H * W

    # NCHW -> (N, C, HW): pure reshape, no transpose / extra HBM traffic.
    x = x_nchw.reshape(N, Cin, HW)
    b1_c = b1.reshape(Cout, 1).astype(jnp.float32)
    b2_c = b2.reshape(Cout, 1).astype(jnp.float32)
    a_r = jnp.asarray(prelu_a, dtype=jnp.float32).reshape(1, 1)

    elt_x = jnp.dtype(x.dtype).itemsize
    elt_o = elt_x

    # ---------------- VMEM planning (explicit budget, per review) -----------
    cap = _vmem_capacity_bytes()
    budget = int(cap * 0.75)                       # ~96 MiB v5e/v6e, ~48 MiB v7x
    margin = 2 * 2**20
    w_bytes = 2 * (Cout * Cin + Cout * Cout + 2 * Cout) * 4   # dbl-buffered weights
    stats_bytes = 3 * Cout * 4
    # per-HW-column bytes: dbl-buffered in/out tiles + f32 intermediates (y, yn, z)
    col_bytes = 2 * Cin * elt_x + 2 * Cout * elt_o + 3 * Cout * 4
    cache_bytes = Cout * HW * 4

    lane_ok = (HW % 128 == 0)
    min_tile = 128 if (lane_ok and HW >= 128) else HW
    if cache_y is None:
        cache_y = (w_bytes + stats_bytes + cache_bytes
                   + col_bytes * min_tile + margin) <= budget

    fixed = w_bytes + stats_bytes + margin + (cache_bytes if cache_y else 0)

    if hw_tile is not None:
        t_hw = int(hw_tile)
    elif not lane_ok:
        t_hw = HW            # full-dim block (legal even if not lane-aligned)
    else:
        avail = max(budget - fixed, col_bytes * min_tile)
        max_cols = max((avail // col_bytes) // 128 * 128, 128)
        if max_cols >= HW:
            t_hw = HW
        else:
            t_hw = int(max_cols)
            while HW % t_hw != 0:   # largest 128-multiple divisor of HW <= max_cols
                t_hw -= 128
    assert HW % t_hw == 0
    n_tiles = HW // t_hw

    needed = fixed + col_bytes * t_hw
    vmem_limit = int(min(max(needed + 4 * 2**20, 32 * 2**20), int(cap * 0.9)))

    if cache_y:
        # Pass 1 keeps the x block index pinned to the last pass-0 block:
        # no input re-fetches at all during the emit pass.
        x_index = lambda n, p, t: (n, 0, t * (1 - p) + (n_tiles - 1) * p)
    else:
        x_index = lambda n, p, t: (n, 0, t)

    kernel = functools.partial(_conv_block_kernel,
                               hw_total=HW, t_hw=t_hw, cache_y=cache_y)

    scratch = [
        pltpu.VMEM((Cout, 1), jnp.float32),   # running sum(y-m0)   -> mean
        pltpu.VMEM((Cout, 1), jnp.float32),   # running sum((y-m0)^2) -> rsqrt(var+eps)
        pltpu.VMEM((Cout, 1), jnp.float32),   # m0 shift (first-tile channel mean)
    ]
    if cache_y:
        scratch.append(pltpu.VMEM((Cout, HW), jnp.float32))   # y = conv1(x)+b1 cache

    out = pl.pallas_call(
        kernel,
        out_shape=jax.ShapeDtypeStruct((N, Cout, HW), x.dtype),
        grid_spec=pltpu.PrefetchScalarGridSpec(
            num_scalar_prefetch=0,
            grid=(N, 2, n_tiles),
            in_specs=[
                pl.BlockSpec((1, Cin, t_hw), x_index),
                pl.BlockSpec((Cout, Cin), lambda n, p, t: (0, 0)),
                pl.BlockSpec((Cout, 1), lambda n, p, t: (0, 0)),
                pl.BlockSpec((Cout, Cout), lambda n, p, t: (0, 0)),
                pl.BlockSpec((Cout, 1), lambda n, p, t: (0, 0)),
                pl.BlockSpec(memory_space=pltpu.MemorySpace.SMEM),  # PReLU slope
            ],
            # Stats pass (p=0) maps every step to output block 0, which is never
            # written -> no garbage write-backs; emit pass (p=1) writes each HW
            # tile exactly once (lane-dense, width t_hw).
            out_specs=pl.BlockSpec((1, Cout, t_hw), lambda n, p, t: (n, 0, t * p)),
            scratch_shapes=scratch,
        ),
        compiler_params=pltpu.CompilerParams(
            dimension_semantics=("parallel", "arbitrary", "arbitrary"),
            vmem_limit_bytes=vmem_limit,
        ),
    )(x, w1, b1_c, w2, b2_c, a_r)

    return out.reshape(N, Cout, H, W)


def conv_block_ref(x_nchw, w1, b1, w2, b2, prelu_a):
    """Pure-JAX reference mirroring the PyTorch forward (channel-major)."""
    N, Cin, H, W = x_nchw.shape
    Cout = w1.shape[0]
    x = x_nchw.reshape(N, Cin, H * W)
    y = jnp.einsum("oc,ncs->nos", w1, x) + b1[None, :, None]
    mean = jnp.mean(y, axis=2, keepdims=True)
    var = jnp.mean((y - mean) ** 2, axis=2, keepdims=True)
    y = (y - mean) / jnp.sqrt(var + EPS)
    y = jnp.maximum(y, 0.0)
    z = jnp.einsum("oc,ncs->nos", w2, y) + b2[None, :, None]
    z = jnp.where(z >= 0.0, z, prelu_a * z)
    return z.reshape(N, Cout, H, W)


if __name__ == "__main__":
    key = jax.random.PRNGKey(0)
    k_x, k_w1, k_b1, k_w2, k_b2 = jax.random.split(key, 5)

    N, Cin, Cout, H, W = 2, 4, 8, 16, 16

    x = jax.random.normal(k_x, (N, Cin, H, W), dtype=jnp.float32)
    # Conv2d(Cin, Cout, 1) weights: (Cout, Cin, 1, 1) -> squeeze to (Cout, Cin)
    w1 = jax.random.normal(k_w1, (Cout, Cin), dtype=jnp.float32) * 0.1
    b1 = jax.random.normal(k_b1, (Cout,), dtype=jnp.float32) * 0.1
    w2 = jax.random.normal(k_w2, (Cout, Cout), dtype=jnp.float32) * 0.1
    b2 = jax.random.normal(k_b2, (Cout,), dtype=jnp.float32) * 0.1
    prelu_a = jnp.asarray(0.25, dtype=jnp.float32)  # nn.PReLU() default init

    ref = conv_block_ref(x, w1, b1, w2, b2, prelu_a)

    # Default plan: y-cache path, full-HW tile (single input read, single pass-1 store).
    out = jax.block_until_ready(conv_block(x, w1, b1, w2, b2, prelu_a))
    assert out.shape == (N, Cout, H, W)
    assert jnp.allclose(out, ref, atol=1e-4, rtol=1e-4)

    # Multi-tile, y-cache path (exercises shifted-stats accumulation + cache slicing).
    out_c = jax.block_until_ready(
        conv_block(x, w1, b1, w2, b2, prelu_a, hw_tile=128, cache_y=True))
    assert jnp.allclose(out_c, ref, atol=1e-4, rtol=1e-4)

    # Multi-tile, recompute fallback path (large-image / small-VMEM configuration).
    out_r = jax.block_until_ready(
        conv_block(x, w1, b1, w2, b2, prelu_a, hw_tile=128, cache_y=False))
    assert jnp.allclose(out_r, ref, atol=1e-4, rtol=1e-4)

    print("KERNEL_OK")
</pallas_src>

<mosaic_0001>
module attributes {stable_mosaic.version = 11 : i64} {
  func.func @_conv_block_kernel(%arg0: i32, %arg1: i32, %arg2: i32, %arg3: memref<1x4x256xf32, #tpu.memory_space<vmem>>, %arg4: memref<8x4xf32, #tpu.memory_space<vmem>>, %arg5: memref<8x1xf32, #tpu.memory_space<vmem>>, %arg6: memref<8x8xf32, #tpu.memory_space<vmem>>, %arg7: memref<8x1xf32, #tpu.memory_space<vmem>>, %arg8: memref<1x1xf32, #tpu.memory_space<smem>>, %arg9: memref<1x8x256xf32, #tpu.memory_space<vmem>>, %arg10: memref<8x1xf32, #tpu.memory_space<vmem>>, %arg11: memref<8x1xf32, #tpu.memory_space<vmem>>, %arg12: memref<8x1xf32, #tpu.memory_space<vmem>>, %arg13: memref<8x256xf32, #tpu.memory_space<vmem>>) attributes {dimension_semantics = [#tpu.dimension_semantics<parallel>, #tpu.dimension_semantics<arbitrary>, #tpu.dimension_semantics<arbitrary>], iteration_bounds = array<i64: 2, 2, 1>, scalar_prefetch = 0 : i64, scratch_operands = 4 : i64, tpu.core_type = #tpu.core_type<tc>, window_params = [{transform_indices = @transform_0, window_bounds = array<i64: 1, 4, 256>}, {pipeline_mode = #tpu.pipeline_mode<synchronous>, transform_indices = @transform_1, window_bounds = array<i64: 8, 4>}, {pipeline_mode = #tpu.pipeline_mode<synchronous>, transform_indices = @transform_2, window_bounds = array<i64: 8, 1>}, {pipeline_mode = #tpu.pipeline_mode<synchronous>, transform_indices = @transform_3, window_bounds = array<i64: 8, 8>}, {pipeline_mode = #tpu.pipeline_mode<synchronous>, transform_indices = @transform_4, window_bounds = array<i64: 8, 1>}, {transform_indices = @transform_5, window_bounds = array<i64: 1, 1>}, {transform_indices = @transform_6, window_bounds = array<i64: 1, 8, 256>}]} {
    %c256_i32 = arith.constant 256 : i32
    %0 = arith.muli %arg2, %c256_i32 : i32
    %1 = tpu.assume_multiple %0, 128 : i32
    %c0_i32 = arith.constant 0 : i32
    %2 = arith.cmpi eq, %arg1, %c0_i32 : i32
    %3 = arith.extui %2 : i1 to i32
    %c0_i32_0 = arith.constant 0 : i32
    %4 = arith.cmpi ne, %3, %c0_i32_0 : i32
    scf.if %4 {
      %c0 = arith.constant 0 : index
      %c0_2 = arith.constant 0 : index
      %8 = vector.load %arg4[%c0, %c0_2] : memref<8x4xf32, #tpu.memory_space<vmem>>, vector<8x4xf32>
      %c0_3 = arith.constant 0 : index
      %c0_4 = arith.constant 0 : index
      %c0_5 = arith.constant 0 : index
      %9 = vector.load %arg3[%c0_3, %c0_4, %c0_5] : memref<1x4x256xf32, #tpu.memory_space<vmem>>, vector<1x4x256xf32>
      %10 = vector.shape_cast %9 : vector<1x4x256xf32> to vector<4x256xf32>
      %cst = arith.constant dense<0.000000e+00> : vector<8x256xf32>
      %11 = tpu.matmul %8, %10, %cst {dimension_numbers = #tpu.dot_dimension_numbers<[1], [0], [0], [1], [0, 0, 1, 1], [], []>} : vector<8x4xf32>, vector<4x256xf32>, vector<8x256xf32> -> vector<8x256xf32>
      %c0_6 = arith.constant 0 : index
      %c0_7 = arith.constant 0 : index
      %12 = vector.load %arg5[%c0_6, %c0_7] : memref<8x1xf32, #tpu.memory_space<vmem>>, vector<8x1xf32>
      %13 = vector.broadcast %12 : vector<8x1xf32> to vector<8x256xf32>
      %14 = arith.addf %11, %13 : vector<8x256xf32>
      %c0_8 = arith.constant 0 : index
      %15 = arith.index_cast %1 : i32 to index
      %16 = vector.load %arg13[%c0_8, %15] : memref<8x256xf32, #tpu.memory_space<vmem>>, vector<8x256xf32>
      tpu.vector_store %arg13[%c0_8, %15], %14 {strides = array<i32>} : memref<8x256xf32, #tpu.memory_space<vmem>>, vector<8x256xf32>,
      %c0_i32_9 = arith.constant 0 : i32
      %17 = arith.cmpi eq, %arg2, %c0_i32_9 : i32
      %18 = arith.extui %17 : i1 to i32
      %c0_i32_10 = arith.constant 0 : i32
      %19 = arith.cmpi ne, %18, %c0_i32_10 : i32
      scf.if %19 {
        %cst_23 = arith.constant dense<0.000000e+00> : vector<8xf32>
        %34 = vector.multi_reduction <add>, %14, %cst_23 [1] : vector<8x256xf32> to vector<8xf32>
        %35 = vector.shape_cast %34 : vector<8xf32> to vector<8x1xf32>
        %cst_24 = arith.constant 3.906250e-03 : f32
        %36 = vector.broadcast %cst_24 : f32 to vector<8x1xf32>
        %37 = arith.mulf %35, %36 : vector<8x1xf32>
        %c0_25 = arith.constant 0 : index
        %c0_26 = arith.constant 0 : index
        %38 = vector.load %arg12[%c0_25, %c0_26] : memref<8x1xf32, #tpu.memory_space<vmem>>, vector<8x1xf32>
        tpu.vector_store %arg12[%c0_25, %c0_26], %37 {strides = array<i32>} : memref<8x1xf32, #tpu.memory_space<vmem>>, vector<8x1xf32>,
        %cst_27 = arith.constant 0.000000e+00 : f32
        %39 = vector.broadcast %cst_27 : f32 to vector<8x1xf32>
        %c0_28 = arith.constant 0 : index
        %c0_29 = arith.constant 0 : index
        %40 = vector.load %arg10[%c0_28, %c0_29] : memref<8x1xf32, #tpu.memory_space<vmem>>, vector<8x1xf32>
        tpu.vector_store %arg10[%c0_28, %c0_29], %39 {strides = array<i32>} : memref<8x1xf32, #tpu.memory_space<vmem>>, vector<8x1xf32>,
        %cst_30 = arith.constant 0.000000e+00 : f32
        %41 = vector.broadcast %cst_30 : f32 to vector<8x1xf32>
        %c0_31 = arith.constant 0 : index
        %c0_32 = arith.constant 0 : index
        %42 = vector.load %arg11[%c0_31, %c0_32] : memref<8x1xf32, #tpu.memory_space<vmem>>, vector<8x1xf32>
        tpu.vector_store %arg11[%c0_31, %c0_32], %41 {strides = array<i32>} : memref<8x1xf32, #tpu.memory_space<vmem>>, vector<8x1xf32>,
      } else {
      }
      %c0_11 = arith.constant 0 : index
      %c0_12 = arith.constant 0 : index
      %20 = vector.load %arg12[%c0_11, %c0_12] : memref<8x1xf32, #tpu.memory_space<vmem>>, vector<8x1xf32>
      %21 = vector.broadcast %20 : vector<8x1xf32> to vector<8x256xf32>
      %22 = arith.subf %14, %21 : vector<8x256xf32>
      %c0_13 = arith.constant 0 : index
      %c0_14 = arith.constant 0 : index
      %23 = vector.load %arg10[%c0_13, %c0_14] : memref<8x1xf32, #tpu.memory_space<vmem>>, vector<8x1xf32>
      %cst_15 = arith.constant dense<0.000000e+00> : vector<8xf32>
      %24 = vector.multi_reduction <add>, %22, %cst_15 [1] : vector<8x256xf32> to vector<8xf32>
      %25 = vector.shape_cast %24 : vector<8xf32> to vector<8x1xf32>
      %26 = arith.addf %23, %25 : vector<8x1xf32>
      %c0_16 = arith.constant 0 : index
      %c0_17 = arith.constant 0 : index
      %27 = vector.load %arg10[%c0_16, %c0_17] : memref<8x1xf32, #tpu.memory_space<vmem>>, vector<8x1xf32>
      tpu.vector_store %arg10[%c0_16, %c0_17], %26 {strides = array<i32>} : memref<8x1xf32, #tpu.memory_space<vmem>>, vector<8x1xf32>,
      %c0_18 = arith.constant 0 : index
      %c0_19 = arith.constant 0 : index
      %28 = vector.load %arg11[%c0_18, %c0_19] : memref<8x1xf32, #tpu.memory_space<vmem>>, vector<8x1xf32>
      %29 = arith.mulf %22, %22 : vector<8x256xf32>
      %cst_20 = arith.constant dense<0.000000e+00> : vector<8xf32>
      %30 = vector.multi_reduction <add>, %29, %cst_20 [1] : vector<8x256xf32> to vector<8xf32>
      %31 = vector.shape_cast %30 : vector<8xf32> to vector<8x1xf32>
      %32 = arith.addf %28, %31 : vector<8x1xf32>
      %c0_21 = arith.constant 0 : index
      %c0_22 = arith.constant 0 : index
      %33 = vector.load %arg11[%c0_21, %c0_22] : memref<8x1xf32, #tpu.memory_space<vmem>>, vector<8x1xf32>
      tpu.vector_store %arg11[%c0_21, %c0_22], %32 {strides = array<i32>} : memref<8x1xf32, #tpu.memory_space<vmem>>, vector<8x1xf32>,
    } else {
    }
    %c1_i32 = arith.constant 1 : i32
    %5 = arith.cmpi eq, %arg1, %c1_i32 : i32
    %6 = arith.extui %5 : i1 to i32
    %c0_i32_1 = arith.constant 0 : i32
    %7 = arith.cmpi ne, %6, %c0_i32_1 : i32
    scf.if %7 {
      %c0_i32_2 = arith.constant 0 : i32
      %8 = arith.cmpi eq, %arg2, %c0_i32_2 : i32
      %9 = arith.extui %8 : i1 to i32
      %c0_i32_3 = arith.constant 0 : i32
      %10 = arith.cmpi ne, %9, %c0_i32_3 : i32
      scf.if %10 {
        %c0_19 = arith.constant 0 : index
        %c0_20 = arith.constant 0 : index
        %35 = vector.load %arg10[%c0_19, %c0_20] : memref<8x1xf32, #tpu.memory_space<vmem>>, vector<8x1xf32>
        %cst_21 = arith.constant 3.906250e-03 : f32
        %36 = vector.broadcast %cst_21 : f32 to vector<8x1xf32>
        %37 = arith.mulf %35, %36 : vector<8x1xf32>
        %c0_22 = arith.constant 0 : index
        %c0_23 = arith.constant 0 : index
        %38 = vector.load %arg11[%c0_22, %c0_23] : memref<8x1xf32, #tpu.memory_space<vmem>>, vector<8x1xf32>
        %cst_24 = arith.constant 3.906250e-03 : f32
        %39 = vector.broadcast %cst_24 : f32 to vector<8x1xf32>
        %40 = arith.mulf %38, %39 : vector<8x1xf32>
        %41 = arith.mulf %37, %37 : vector<8x1xf32>
        %42 = arith.subf %40, %41 : vector<8x1xf32>
        %cst_25 = arith.constant 0.000000e+00 : f32
        %43 = vector.broadcast %cst_25 : f32 to vector<8x1xf32>
        %44 = arith.maximumf %42, %43 : vector<8x1xf32>
        %c0_26 = arith.constant 0 : index
        %c0_27 = arith.constant 0 : index
        %45 = vector.load %arg12[%c0_26, %c0_27] : memref<8x1xf32, #tpu.memory_space<vmem>>, vector<8x1xf32>
        %46 = arith.addf %45, %37 : vector<8x1xf32>
        %c0_28 = arith.constant 0 : index
        %c0_29 = arith.constant 0 : index
        %47 = vector.load %arg10[%c0_28, %c0_29] : memref<8x1xf32, #tpu.memory_space<vmem>>, vector<8x1xf32>
        tpu.vector_store %arg10[%c0_28, %c0_29], %46 {strides = array<i32>} : memref<8x1xf32, #tpu.memory_space<vmem>>, vector<8x1xf32>,
        %cst_30 = arith.constant 9.99999974E-6 : f32
        %48 = vector.broadcast %cst_30 : f32 to vector<8x1xf32>
        %49 = arith.addf %44, %48 : vector<8x1xf32>
        %50 = math.rsqrt %49 : vector<8x1xf32>
        %c0_31 = arith.constant 0 : index
        %c0_32 = arith.constant 0 : index
        %51 = vector.load %arg11[%c0_31, %c0_32] : memref<8x1xf32, #tpu.memory_space<vmem>>, vector<8x1xf32>
        tpu.vector_store %arg11[%c0_31, %c0_32], %50 {strides = array<i32>} : memref<8x1xf32, #tpu.memory_space<vmem>>, vector<8x1xf32>,
      } else {
      }
      %c0 = arith.constant 0 : index
      %11 = arith.index_cast %1 : i32 to index
      %12 = vector.load %arg13[%c0, %11] : memref<8x256xf32, #tpu.memory_space<vmem>>, vector<8x256xf32>
      %c0_4 = arith.constant 0 : index
      %c0_5 = arith.constant 0 : index
      %13 = vector.load %arg10[%c0_4, %c0_5] : memref<8x1xf32, #tpu.memory_space<vmem>>, vector<8x1xf32>
      %14 = vector.broadcast %13 : vector<8x1xf32> to vector<8x256xf32>
      %15 = arith.subf %12, %14 : vector<8x256xf32>
      %c0_6 = arith.constant 0 : index
      %c0_7 = arith.constant 0 : index
      %16 = vector.load %arg11[%c0_6, %c0_7] : memref<8x1xf32, #tpu.memory_space<vmem>>, vector<8x1xf32>
      %17 = vector.broadcast %16 : vector<8x1xf32> to vector<8x256xf32>
      %18 = arith.mulf %15, %17 : vector<8x256xf32>
      %cst = arith.constant 0.000000e+00 : f32
      %19 = vector.broadcast %cst : f32 to vector<8x256xf32>
      %20 = arith.maximumf %18, %19 : vector<8x256xf32>
      %c0_8 = arith.constant 0 : index
      %c0_9 = arith.constant 0 : index
      %21 = vector.load %arg6[%c0_8, %c0_9] : memref<8x8xf32, #tpu.memory_space<vmem>>, vector<8x8xf32>
      %cst_10 = arith.constant dense<0.000000e+00> : vector<8x256xf32>
      %22 = tpu.matmul %21, %20, %cst_10 {dimension_numbers = #tpu.dot_dimension_numbers<[1], [0], [0], [1], [0, 0, 1, 1], [], []>} : vector<8x8xf32>, vector<8x256xf32>, vector<8x256xf32> -> vector<8x256xf32>
      %c0_11 = arith.constant 0 : index
      %c0_12 = arith.constant 0 : index
      %23 = vector.load %arg7[%c0_11, %c0_12] : memref<8x1xf32, #tpu.memory_space<vmem>>, vector<8x1xf32>
      %24 = vector.broadcast %23 : vector<8x1xf32> to vector<8x256xf32>
      %25 = arith.addf %22, %24 : vector<8x256xf32>
      %c0_13 = arith.constant 0 : index
      %c0_14 = arith.constant 0 : index
      %26 = memref.load %arg8[%c0_13, %c0_14] : memref<1x1xf32, #tpu.memory_space<smem>>
      %cst_15 = arith.constant 0.000000e+00 : f32
      %27 = vector.broadcast %cst_15 : f32 to vector<8x256xf32>
      %28 = arith.cmpf oge, %25, %27 : vector<8x256xf32>
      %29 = vector.broadcast %26 : f32 to vector<8x256xf32>
      %30 = arith.mulf %29, %25 : vector<8x256xf32>
      %31 = arith.select %28, %25, %30 : vector<8x256xi1>, vector<8x256xf32>
      %c0_16 = arith.constant 0 : index
      %c0_17 = arith.constant 0 : index
      %c0_18 = arith.constant 0 : index
      %32 = vector.load %arg9[%c0_16, %c0_17, %c0_18] : memref<1x8x256xf32, #tpu.memory_space<vmem>>, vector<1x8x256xf32>
      %33 = vector.shape_cast %32 : vector<1x8x256xf32> to vector<8x256xf32>
      %34 = vector.shape_cast %31 : vector<8x256xf32> to vector<1x8x256xf32>
      tpu.vector_store %arg9[%c0_16, %c0_17, %c0_18], %34 {strides = array<i32>} : memref<1x8x256xf32, #tpu.memory_space<vmem>>, vector<1x8x256xf32>,
    } else {
    }
    return
  }
  func.func @transform_0(%arg0: i32, %arg1: i32, %arg2: i32) -> (i32, i32, i32) {
    %c1_i32 = arith.constant 1 : i32
    %0 = arith.subi %c1_i32, %arg1 : i32
    %1 = arith.muli %arg2, %0 : i32
    %c0_i32 = arith.constant 0 : i32
    %2 = arith.muli %c0_i32, %arg1 : i32
    %3 = arith.addi %1, %2 : i32
    %c0_i32_0 = arith.constant 0 : i32
    %c0_i32_1 = arith.constant 0 : i32
    return %arg0, %c0_i32_0, %3 : i32, i32, i32
  }
  func.func @transform_1(%arg0: i32, %arg1: i32, %arg2: i32) -> (i32, i32) {
    %c0_i32 = arith.constant 0 : i32
    %c0_i32_0 = arith.constant 0 : i32
    %c0_i32_1 = arith.constant 0 : i32
    return %c0_i32, %c0_i32_0 : i32, i32
  }
  func.func @transform_2(%arg0: i32, %arg1: i32, %arg2: i32) -> (i32, i32) {
    %c0_i32 = arith.constant 0 : i32
    %c0_i32_0 = arith.constant 0 : i32
    %c0_i32_1 = arith.constant 0 : i32
    return %c0_i32, %c0_i32_0 : i32, i32
  }
  func.func @transform_3(%arg0: i32, %arg1: i32, %arg2: i32) -> (i32, i32) {
    %c0_i32 = arith.constant 0 : i32
    %c0_i32_0 = arith.constant 0 : i32
    %c0_i32_1 = arith.constant 0 : i32
    return %c0_i32, %c0_i32_0 : i32, i32
  }
  func.func @transform_4(%arg0: i32, %arg1: i32, %arg2: i32) -> (i32, i32) {
    %c0_i32 = arith.constant 0 : i32
    %c0_i32_0 = arith.constant 0 : i32
    %c0_i32_1 = arith.constant 0 : i32
    return %c0_i32, %c0_i32_0 : i32, i32
  }
  func.func @transform_5(%arg0: i32, %arg1: i32, %arg2: i32) -> (i32, i32) {
    %c0_i32 = arith.constant 0 : i32
    %c0_i32_0 = arith.constant 0 : i32
    %c0_i32_1 = arith.constant 0 : i32
    return %c0_i32, %c0_i32_0 : i32, i32
  }
  func.func @transform_6(%arg0: i32, %arg1: i32, %arg2: i32) -> (i32, i32, i32) {
    %0 = arith.muli %arg2, %arg1 : i32
    %c0_i32 = arith.constant 0 : i32
    %c0_i32_0 = arith.constant 0 : i32
    return %arg0, %c0_i32, %0 : i32, i32, i32
  }
}

</mosaic_0001>

<llo_original>
// kernel: tpu_custom_call.1
$region0: #{tpu_custom_call.1}
  #allocation0 [shape = 'u32[]', space=smem, size = 0x4, offset = 0x4, fixed_abs, tag = 'smem constant byte address 0x4 - core index']
  #allocation1 [shape = 'u32[72,128]{1,0:T(1,128)}', space=vmem, size = 0x9000, scoped, tag = 'internal scratch']
  #allocation2 [shape = 'f32[8,1]{1,0:T(8,128)}', space=vmem, size = 0x1000, scoped, tag = 'scratch operand']
  #allocation3 [shape = 'f32[8,1]{1,0:T(8,128)}', space=vmem, size = 0x1000, scoped, tag = 'scratch operand']
  #allocation4 [shape = 'f32[8,1]{1,0:T(8,128)}', space=vmem, size = 0x1000, scoped, tag = 'scratch operand']
  #allocation5 [shape = 'f32[8,256]{1,0:T(8,128)}', space=vmem, size = 0x2000, scoped, tag = 'scratch operand']
  #allocation6 [shape = 'f32[1,1]{1,0:T(1,128)S(6)}', space=smem, size = 0x200, scoped, tag = 'scoped memory for tpu_custom_call.1']
  %s0 = inlined_call_operand.vmem [shape: f32[2,4,256], index: 0, kind: input, shape index: {}]
  %s1 = inlined_call_operand.vmem [shape: f32[8,4], index: 1, kind: input, shape index: {}]
  %s2 = inlined_call_operand.vmem [shape: f32[8,1], index: 2, kind: input, shape index: {}]
  %s3 = inlined_call_operand.vmem [shape: f32[8,8], index: 3, kind: input, shape index: {}]
  %s4 = inlined_call_operand.vmem [shape: f32[8,1], index: 4, kind: input, shape index: {}]
  %s5 = inlined_call_operand.<no memory space> [shape: f32[1,1], index: 5, kind: input, shape index: {}]
  %s6 = inlined_call_operand.hbm [shape: f32[2,8,256], index: 6, kind: output, shape index: {}]
  %s7 = sld [smem:[#allocation0]]
  $region73: #{tpu_custom_call.1} parent=0
    _
  %s9 = ssub.s32 1, %s7
  %s10 = scalar_select 0, %s9, %s7
  %11 = sst [smem:[#allocation6]] %s5
  $region1: #{tpu_custom_call.1} parent=0
    #allocation7 [shape = 'u8[16384]{0}', space=vmem, size = 0x4000, scoped, tag = 'output window, operand 0']
    #allocation8 [shape = 's32[2]{0}', space=sflag, size = 0x8, scoped, tag = 'scoped memory for tpu_custom_call.1']
    %12 = vsyncpa [#allocation8], 0
    %s13 = scalar_lea.sflag [#allocation8], 1
    %14 = vsyncpa %s13, 0
    loop: start=0, step=1, limit=6
    $region2: #{tpu_custom_call.1} parent=1 // loop_pre_header
      _
    $region3: #{tpu_custom_call.1} parent=1 // loop_header
      %s16 = sphi 0, %s20
      %p17 = scmp.ge.s32.totalorder %s16, 6
      %s23 = sphi 0, %s42
      %s24 = sphi 0, %s38
      %s25 = sphi 0, %s34
      %s26 = sphi 0, %s23
      %s27 = sphi 0, %s24
      %s28 = sphi 0, %s25
      %s29 = sphi 0, %s26
      %s30 = sphi 0, %s27
      %s31 = sphi 0, %s28
      %s51 = sphi 0, %s53
      %s54 = sphi 0, %s51
      %s55 = sphi 0, %s54
      %s71 = sphi 0, %s55
      %s75 = sphi 0, %s75
      %s77 = sphi 0, %s75
      %s78 = sphi 0, %s77
      %s92 = sphi 0, %s78
      %s96 = sphi 0, %s96
      %s98 = sphi 0, %s96
      %s99 = sphi 0, %s98
      %s113 = sphi 0, %s99
      %s117 = sphi 0, %s117
      %s119 = sphi 0, %s117
      %s120 = sphi 0, %s119
      %s134 = sphi 0, %s120
      %s138 = sphi 0, %s138
      %s140 = sphi 0, %s138
      %s141 = sphi 0, %s140
      %s155 = sphi 0, %s141
      %s159 = sphi 0, %s159
      %s161 = sphi 0, %s159
      %s162 = sphi 0, %s161
      %s176 = sphi 0, %s162
      %s186 = sphi 0, %s188
      %s189 = sphi 0, %s186
      %s190 = sphi 0, %s189
      %s206 = sphi 0, %s190
    $region4: #{tpu_custom_call.1} parent=1 // loop_header_branch
      %19 = sbr.rel (%p17) target = $region8
    $region5: #{tpu_custom_call.1} parent=1 // loop_body
      %s21 = ssub.s32 %s16, 1
      %s22 = ssub.s32 %s16, 2
      %s32 = sadd.s32 1, %s25
      %p33 = scmp.ge.s32.totalorder %s32, 1
      %s34 = scalar_select %p33, 0, %s32
      %s35 = sadd.s32 1, %s24
      %s36 = scalar_select %p33, %s35, %s24
      %p37 = scmp.ge.s32.totalorder %s36, 2
      %s38 = scalar_select %p37, 0, %s36
      %s39 = sadd.s32 1, %s23
      %s40 = scalar_select %p37, %s39, %s23
      %p41 = scmp.ge.s32.totalorder %s40, 2
      %s42 = scalar_select %p41, 0, %s40
      %s43 = ssub.s32 1, %s24
      %s44 = smul.u32 %s25, %s43
      %s45 = ssub.s32 1, %s38
      %s46 = smul.u32 %s34, %s45
      %s47 = ssub.s32 %s23, %s42
      %s48 = ssub.s32 %s44, %s46
      %s49 = sor.u32 %s47, %s48
      %p50 = scmp.eq.s32.totalorder %s49, 0
      %s52 = sadd.s32 %s51, 1
      %s53 = scalar_select %p50, %s51, %s52
      %p56 = pneg %p50
      %p57 = scmp.eq.s32.totalorder %s16, 3
      %p58 = por %p56, %p57
      %p59 = scmp.ne.s32.totalorder %s51, %s54
      %p60 = scmp.eq.s32.totalorder %s16, 0
      %p61 = por %p59, %p60
      %p62 = scmp.ne.s32.totalorder %s51, %s54
      %p63 = scmp.eq.s32.totalorder %s21, 3
      %p64 = por %p62, %p63
      %p65 = scmp.ne.s32.totalorder %s54, %s55
      %p66 = scmp.eq.s32.totalorder %s21, 0
      %p67 = por %p65, %p66
      %p68 = scmp.ne.s32.totalorder %s54, %s55
      %p69 = scmp.eq.s32.totalorder %s22, 3
      %p70 = por %p68, %p69
      %p72 = scmp.ne.s32.totalorder %s55, %s71
      %p73 = scmp.eq.s32.totalorder %s22, 0
      %p74 = por %p72, %p73
      %s76 = sadd.s32 %s75, 1
      %p79 = scmp.eq.s32.totalorder %s16, 3
      %p80 = scmp.ne.s32.totalorder %s75, %s77
      %p81 = scmp.eq.s32.totalorder %s16, 0
      %p82 = por %p80, %p81
      %p83 = scmp.ne.s32.totalorder %s75, %s77
      %p84 = scmp.eq.s32.totalorder %s21, 3
      %p85 = por %p83, %p84
      %p86 = scmp.ne.s32.totalorder %s77, %s78
      %p87 = scmp.eq.s32.totalorder %s21, 0
      %p88 = por %p86, %p87
      %p89 = scmp.ne.s32.totalorder %s77, %s78
      %p90 = scmp.eq.s32.totalorder %s22, 3
      %p91 = por %p89, %p90
      %p93 = scmp.ne.s32.totalorder %s78, %s92
      %p94 = scmp.eq.s32.totalorder %s22, 0
      %p95 = por %p93, %p94
      %s97 = sadd.s32 %s96, 1
      %p100 = scmp.eq.s32.totalorder %s16, 3
      %p101 = scmp.ne.s32.totalorder %s96, %s98
      %p102 = scmp.eq.s32.totalorder %s16, 0
      %p103 = por %p101, %p102
      %p104 = scmp.ne.s32.totalorder %s96, %s98
      %p105 = scmp.eq.s32.totalorder %s21, 3
      %p106 = por %p104, %p105
      %p107 = scmp.ne.s32.totalorder %s98, %s99
      %p108 = scmp.eq.s32.totalorder %s21, 0
      %p109 = por %p107, %p108
      %p110 = scmp.ne.s32.totalorder %s98, %s99
      %p111 = scmp.eq.s32.totalorder %s22, 3
      %p112 = por %p110, %p111
      %p114 = scmp.ne.s32.totalorder %s99, %s113
      %p115 = scmp.eq.s32.totalorder %s22, 0
      %p116 = por %p114, %p115
      %s118 = sadd.s32 %s117, 1
      %p121 = scmp.eq.s32.totalorder %s16, 3
      %p122 = scmp.ne.s32.totalorder %s117, %s119
      %p123 = scmp.eq.s32.totalorder %s16, 0
      %p124 = por %p122, %p123
      %p125 = scmp.ne.s32.totalorder %s117, %s119
      %p126 = scmp.eq.s32.totalorder %s21, 3
      %p127 = por %p125, %p126
      %p128 = scmp.ne.s32.totalorder %s119, %s120
      %p129 = scmp.eq.s32.totalorder %s21, 0
      %p130 = por %p128, %p129
      %p131 = scmp.ne.s32.totalorder %s119, %s120
      %p132 = scmp.eq.s32.totalorder %s22, 3
      %p133 = por %p131, %p132
      %p135 = scmp.ne.s32.totalorder %s120, %s134
      %p136 = scmp.eq.s32.totalorder %s22, 0
      %p137 = por %p135, %p136
      %s139 = sadd.s32 %s138, 1
      %p142 = scmp.eq.s32.totalorder %s16, 3
      %p143 = scmp.ne.s32.totalorder %s138, %s140
      %p144 = scmp.eq.s32.totalorder %s16, 0
      %p145 = por %p143, %p144
      %p146 = scmp.ne.s32.totalorder %s138, %s140
      %p147 = scmp.eq.s32.totalorder %s21, 3
      %p148 = por %p146, %p147
      %p149 = scmp.ne.s32.totalorder %s140, %s141
      %p150 = scmp.eq.s32.totalorder %s21, 0
      %p151 = por %p149, %p150
      %p152 = scmp.ne.s32.totalorder %s140, %s141
      %p153 = scmp.eq.s32.totalorder %s22, 3
      %p154 = por %p152, %p153
      %p156 = scmp.ne.s32.totalorder %s141, %s155
      %p157 = scmp.eq.s32.totalorder %s22, 0
      %p158 = por %p156, %p157
      %s160 = sadd.s32 %s159, 1
      %p163 = scmp.eq.s32.totalorder %s16, 3
      %p164 = scmp.ne.s32.totalorder %s159, %s161
      %p165 = scmp.eq.s32.totalorder %s16, 0
      %p166 = por %p164, %p165
      %p167 = scmp.ne.s32.totalorder %s159, %s161
      %p168 = scmp.eq.s32.totalorder %s21, 3
      %p169 = por %p167, %p168
      %p170 = scmp.ne.s32.totalorder %s161, %s162
      %p171 = scmp.eq.s32.totalorder %s21, 0
      %p172 = por %p170, %p171
      %p173 = scmp.ne.s32.totalorder %s161, %s162
      %p174 = scmp.eq.s32.totalorder %s22, 3
      %p175 = por %p173, %p174
      %p177 = scmp.ne.s32.totalorder %s162, %s176
      %p178 = scmp.eq.s32.totalorder %s22, 0
      %p179 = por %p177, %p178
      %s180 = smul.u32 %s25, %s24
      %s181 = smul.u32 %s34, %s38
      %s182 = ssub.s32 %s23, %s42
      %s183 = ssub.s32 %s180, %s181
      %s184 = sor.u32 %s182, %s183
      %p185 = scmp.eq.s32.totalorder %s184, 0
      %s187 = sadd.s32 %s186, 1
      %s188 = scalar_select %p185, %s186, %s187
      %p191 = pneg %p185
      %p192 = scmp.eq.s32.totalorder %s16, 3
      %p193 = por %p191, %p192
      %p194 = scmp.ne.s32.totalorder %s186, %s189
      %p195 = scmp.eq.s32.totalorder %s16, 0
      %p196 = por %p194, %p195
      %p197 = scmp.ne.s32.totalorder %s186, %s189
      %p198 = scmp.eq.s32.totalorder %s21, 3
      %p199 = por %p197, %p198
      %p200 = scmp.ne.s32.totalorder %s189, %s190
      %p201 = scmp.eq.s32.totalorder %s21, 0
      %p202 = por %p200, %p201
      %p203 = scmp.ne.s32.totalorder %s189, %s190
      %p204 = scmp.eq.s32.totalorder %s22, 3
      %p205 = por %p203, %p204
      %p207 = scmp.ne.s32.totalorder %s190, %s206
      %p208 = scmp.eq.s32.totalorder %s22, 0
      %p209 = por %p207, %p208
      %p210 = scmp.le.s32.totalorder 1, %s16
      %p211 = scmp.lt.s32.totalorder %s16, 5
      %p212 = pnand %p210, %p211
      %p213 = pneg %p212
      // Predicated region
      $region9: #{tpu_custom_call.1} parent=5 // pred_check
        _
      $region10: #{tpu_custom_call.1} parent=5 // pred_check_branch
        %215 = sbr.rel (%p212) target = $region12
      $region11: #{tpu_custom_call.1} parent=5 // pred_region
        %s216 = ssub.s32 %s16, 1
        // Predicated region
        $region13: #{tpu_custom_call.1} parent=11 // pred_check
          %p217 = pneg %p88
        $region14: #{tpu_custom_call.1} parent=11 // pred_check_branch
          %219 = sbr.rel (%p217) target = $region16
        $region15: #{tpu_custom_call.1} parent=11 // pred_region
          _
        $region16: #{tpu_custom_call.1} parent=11 // pred_fallthru
          _
        // Predicated region
        $region17: #{tpu_custom_call.1} parent=11 // pred_check
          %p220 = pneg %p109
        $region18: #{tpu_custom_call.1} parent=11 // pred_check_branch
          %222 = sbr.rel (%p220) target = $region20
        $region19: #{tpu_custom_call.1} parent=11 // pred_region
          _
        $region20: #{tpu_custom_call.1} parent=11 // pred_fallthru
          _
        // Predicated region
        $region21: #{tpu_custom_call.1} parent=11 // pred_check
          %p223 = pneg %p130
        $region22: #{tpu_custom_call.1} parent=11 // pred_check_branch
          %225 = sbr.rel (%p223) target = $region24
        $region23: #{tpu_custom_call.1} parent=11 // pred_region
          _
        $region24: #{tpu_custom_call.1} parent=11 // pred_fallthru
          _
        // Predicated region
        $region25: #{tpu_custom_call.1} parent=11 // pred_check
          %p226 = pneg %p151
        $region26: #{tpu_custom_call.1} parent=11 // pred_check_branch
          %228 = sbr.rel (%p226) target = $region28
        $region27: #{tpu_custom_call.1} parent=11 // pred_region
          _
        $region28: #{tpu_custom_call.1} parent=11 // pred_fallthru
          _
        // Predicated region
        $region29: #{tpu_custom_call.1} parent=11 // pred_check
          %p229 = pneg %p172
        $region30: #{tpu_custom_call.1} parent=11 // pred_check_branch
          %231 = sbr.rel (%p229) target = $region32
        $region31: #{tpu_custom_call.1} parent=11 // pred_region
          _
        $region32: #{tpu_custom_call.1} parent=11 // pred_fallthru
          _
      $region12: #{tpu_custom_call.1} parent=5 // pred_fallthru
        _
      %p232 = scmp.lt.s32.totalorder %s16, 4
      // Predicated region
      $region33: #{tpu_custom_call.1} parent=5 // pred_check
        %p233 = pneg %p232
      $region34: #{tpu_custom_call.1} parent=5 // pred_check_branch
        %235 = sbr.rel (%p233) target = $region36
      $region35: #{tpu_custom_call.1} parent=5 // pred_region
        // Predicated region
        $region37: #{tpu_custom_call.1} parent=35 // pred_check
          %p236 = pneg %p61
        $region38: #{tpu_custom_call.1} parent=35 // pred_check_branch
          %238 = sbr.rel (%p236) target = $region40
        $region39: #{tpu_custom_call.1} parent=35 // pred_region
          %s239 = ssub.s32 1, %s24
          %s240 = smul.u32 %s25, %s239
          %s241 = smul.u32 2, %s240
          %p242 = scmp.lt.s32.totalorder %s23, 1
          %s243 = scalar_select %p242, %s23, 1
          %p244 = scmp.lt.s32.totalorder %s241, 1
          %s245 = scalar_select %p244, %s241, 1
          %s246 = smul.addr %s243, 2
          %s247 = sadd.s32 %s245, %s246
          %s248 = smul.addr %s247, 4
          %s249 = scalar_lea.vmem %s0, %s248
          %s250 = ssub.s32 1, %s24
          %s251 = smul.u32 %s25, %s250
          %s252 = smul.u32 2, %s251
        $region40: #{tpu_custom_call.1} parent=35 // pred_fallthru
          _
      $region36: #{tpu_custom_call.1} parent=5 // pred_fallthru
        _
      %p253 = scmp.le.s32.totalorder 1, %s16
      %p254 = scmp.lt.s32.totalorder %s16, 5
      %p255 = pnand %p253, %p254
      %p256 = pneg %p255
      // Predicated region
      $region41: #{tpu_custom_call.1} parent=5 // pred_check
        _
      $region42: #{tpu_custom_call.1} parent=5 // pred_check_branch
        %258 = sbr.rel (%p255) target = $region44
      $region43: #{tpu_custom_call.1} parent=5 // pred_region
        %s259 = ssub.s32 %s16, 1
        %s260 = ssub.s32 1, %s27
        %s261 = smul.u32 %s28, %s260
        %s262 = smul.u32 2, %s261
        %p263 = scmp.lt.s32.totalorder %s26, 1
        %s264 = scalar_select %p263, %s26, 1
        %p265 = scmp.lt.s32.totalorder %s262, 1
        %s266 = scalar_select %p265, %s262, 1
        %s267 = smul.addr %s264, 2
        %s268 = sadd.s32 %s266, %s267
        %s269 = smul.addr %s268, 4
        %s270 = scalar_lea.vmem %s0, %s269
        %p271 = pneg %p67
        %p272 = pneg %p64
        %p273 = pneg %p88
        %p274 = pneg %p85
        %p275 = pneg %p109
        %p276 = pneg %p106
        %p277 = pneg %p130
        %p278 = pneg %p127
        %p279 = pneg %p151
        %p280 = pneg %p148
        %p281 = pneg %p172
        %p282 = pneg %p169
        %p283 = pneg %p202
        %p284 = pneg %p199
        %s285 = sand.u32 %s189, 1
        %s286 = scalar_lea.sflag [#allocation8], %s285
        %s287 = sand.u32 %s189, 1
        %s288 = smul.addr %s287, 16
        %s289 = scalar_lea.vmem [#allocation7], %s288
        %s290 = ssub.s32 1, %s27
        %s291 = smul.u32 %s28, %s290
        %s292 = smul.u32 2, %s291
        %p293 = scmp.lt.s32.totalorder %s26, 1
        %s294 = scalar_select %p293, %s26, 1
        %p295 = scmp.lt.s32.totalorder %s292, 1
        %s296 = scalar_select %p295, %s292, 1
        %s297 = smul.addr %s294, 2
        %s298 = sadd.s32 %s296, %s297
        %s299 = smul.addr %s298, 4
        %s300 = scalar_lea.vmem %s0, %s299
        %s301 = ssub.s32 1, %s27
        %s302 = smul.u32 %s28, %s301
        %s303 = smul.u32 2, %s302
        %s304 = smul.u32 %s28, %s27
        %s305 = smul.u32 2, %s304
        %s306 = smul.u32 %s28, 256
        %p307 = scmp.eq.s32.totalorder %s27, 0
        // Predicated region
        $region45: #{tpu_custom_call.1} parent=43 // pred_check
          %p308 = pneg %p307
        $region46: #{tpu_custom_call.1} parent=43 // pred_check_branch
          %310 = sbr.rel (%p308) target = $region48
        $region47: #{tpu_custom_call.1} parent=43 // pred_region
          %v311 = vld [vmem:[%s1] sm:$0xff]
          %v312 = vld [vmem:[%s300] sm:$0xff]
          %v313 = vld [vmem:[%s2] sm:$0xff]
          %315 = vset.pattern.permute.xlu0 0
          %316 = vperm.xlu0 %315, %v313
          %v317 = vpop.permute.xlu0 %316
          %320 = vst [vmem:[#allocation1] ss:$2 sm:$0xff] %v312
          %v321 = vld.sshfl [vmem:[#allocation1] sm:$0xff pattern:$0x75316420]
          %v322 = vld.sshfl [vmem:[#allocation1 + $0x8] sm:$0xff pattern:$0x75316420]
          %vm323 = vcmask 31744
          %v325 = vsel %vm323, %v311, 0
          %vm327 = vcmask 1043456
          %v328 = vsel %vm327, %v321, 0
          %v330 = vsel %vm327, %v322, 0
          %332 = vmatpush.msra.mxu0 0.0
          %333 = vmatpush.msra.mxu0 0.0
          %334 = vmatpush.msra.mxu0 0.0
          %335 = vmatpush.msra.mxu0 0.0
          %336 = vmatpush.msra.mxu0 0.0
          %337 = vmatpush.msra.mxu0 0.0
          %338 = vmatpush.msra.mxu0 0.0
          %339 = vmatpush.msra.mxu0 0.0
          %340 = vmatpush.msra.mxu0 0.0
          %341 = vmatpush.msra.mxu0 0.0
          %342 = vmatpush.msra.mxu0 0.0
          %343 = vmatpush.msra.mxu0 0.0
          %344 = vmatpush.msra.mxu0 0.0
          %345 = vmatpush.msra.mxu0 0.0
          %346 = vmatpush.msra.mxu0 0.0
          %347 = vmatpush.msra.mxu0 %v328
          %348 = vmatmul.f32.gmra.mxu0 %v325
          %v349 = vpop.f32.mrf.mxu0
          %v350 = vadd.f32 %v317, %v349
          %351 = vdwg.mxu0
          %352 = vmatpush.msra.mxu0 0.0
          %353 = vmatpush.msra.mxu0 0.0
          %354 = vmatpush.msra.mxu0 0.0
          %355 = vmatpush.msra.mxu0 0.0
          %356 = vmatpush.msra.mxu0 0.0
          %357 = vmatpush.msra.mxu0 0.0
          %358 = vmatpush.msra.mxu0 0.0
          %359 = vmatpush.msra.mxu0 0.0
          %360 = vmatpush.msra.mxu0 0.0
          %361 = vmatpush.msra.mxu0 0.0
          %362 = vmatpush.msra.mxu0 0.0
          %363 = vmatpush.msra.mxu0 0.0
          %364 = vmatpush.msra.mxu0 0.0
          %365 = vmatpush.msra.mxu0 0.0
          %366 = vmatpush.msra.mxu0 0.0
          %367 = vmatpush.msra.mxu0 %v330
          %368 = vmatmul.f32.gmra.mxu0 %v325
          %v369 = vpop.f32.mrf.mxu0
          %v370 = vadd.f32 %v317, %v369
          %371 = vdwg.mxu0
          %s372 = sshra.s32 %s306, 7
          %s373 = sand.u32 %s306, 127
          %s374 = smul.addr %s372, 8
          %s375 = scalar_lea.vmem [#allocation5], %s374
          %376 = vst [vmem:[%s375] sm:$0xff] %v350
          %377 = vst [vmem:[%s375 + $0x8] sm:$0xff] %v370
          %p378 = scmp.eq.s32.totalorder %s28, 0
          // Predicated region
          $region49: #{tpu_custom_call.1} parent=47 // pred_check
            %p379 = pneg %p378
          $region50: #{tpu_custom_call.1} parent=47 // pred_check_branch
            %381 = sbr.rel (%p379) target = $region52
          $region51: #{tpu_custom_call.1} parent=47 // pred_region
            %v382 = vadd.f32 %v350, %v370
            %383 = vadd.xlane.f32.xlu0 %v382
            %v384 = vpop.xlane.xlu0 %383
            %v385 = vmul.f32 %v384, 0.00390625
            %vm386 = vcmask 7168
            %387 = vst.msk [vmem:[#allocation4] sm:$0xff] %vm386, %v385
            %388 = vst.msk [vmem:[#allocation2] sm:$0xff] %vm386, 0.0
            %389 = vst.msk [vmem:[#allocation3] sm:$0xff] %vm386, 0.0
          $region52: #{tpu_custom_call.1} parent=47 // pred_fallthru
            _
          %v390 = vld [vmem:[#allocation4] sm:$0xff]
          %392 = vset.pattern.permute.xlu0 0
          %393 = vperm.xlu0 %392, %v390
          %v394 = vpop.permute.xlu0 %393
          %v396 = vsub.f32 %v350, %v394
          %v397 = vsub.f32 %v370, %v394
          %v398 = vld [vmem:[#allocation2] sm:$0xff]
          %v399 = vadd.f32 %v396, %v397
          %400 = vadd.xlane.f32.xlu0 %v399
          %v401 = vpop.xlane.xlu0 %400
          %v402 = vadd.f32 %v398, %v401
          %vm403 = vcmask 7168
          %404 = vst.msk [vmem:[#allocation2] sm:$0xff] %vm403, %v402
          %v405 = vld [vmem:[#allocation3] sm:$0xff]
          %v406 = vmul.f32 %v396, %v396
          %v407 = vmul.f32 %v397, %v397
          %v408 = vadd.f32 %v406, %v407
          %409 = vadd.xlane.f32.xlu0 %v408
          %v410 = vpop.xlane.xlu0 %409
          %v411 = vadd.f32 %v405, %v410
          %412 = vst.msk [vmem:[#allocation3] sm:$0xff] %vm403, %v411
        $region48: #{tpu_custom_call.1} parent=43 // pred_fallthru
          _
        %p413 = scmp.eq.s32.totalorder %s27, 1
        // Predicated region
        $region53: #{tpu_custom_call.1} parent=43 // pred_check
          %p414 = pneg %p413
        $region54: #{tpu_custom_call.1} parent=43 // pred_check_branch
          %416 = sbr.rel (%p414) target = $region56
        $region55: #{tpu_custom_call.1} parent=43 // pred_region
          %p417 = scmp.eq.s32.totalorder %s28, 0
          // Predicated region
          $region57: #{tpu_custom_call.1} parent=55 // pred_check
            %p418 = pneg %p417
          $region58: #{tpu_custom_call.1} parent=55 // pred_check_branch
            %420 = sbr.rel (%p418) target = $region60
          $region59: #{tpu_custom_call.1} parent=55 // pred_region
            %v421 = vld [vmem:[#allocation2] sm:$0xff]
            %v422 = vmul.f32 %v421, 0.00390625
            %v423 = vld [vmem:[#allocation3] sm:$0xff]
            %v424 = vmul.f32 %v423, 0.00390625
            %v425 = vmul.f32 %v422, %v422
            %v426 = vsub.f32 %v424, %v425
            %v427 = vmax.f32 %v426, 0.0
            %v428 = vld [vmem:[#allocation4] sm:$0xff]
            %v429 = vadd.f32 %v428, %v422
            %vm430 = vcmask 7168
            %431 = vst.msk [vmem:[#allocation2] sm:$0xff] %vm430, %v429
            %v432 = vadd.f32 %v427, 1e-05
            %v433 = vrsqrt.pop %v432
            %v434 = vmul.f32 %v433, %v432
            %v435 = vmul.f32 %v434, %v433
            %v436 = vmul.f32 0.5, %v435
            %v437 = vsub.f32 1.5, %v436
            %v438 = vmul.f32 %v433, %v437
            %vm439 = vweird.f32 %v432
            %vm440 = vweird.f32 %v433
            %vm441 = vmor %vm439, %vm440
            %v442 = vsel %vm441, %v433, %v438
            %443 = vst.msk [vmem:[#allocation3] sm:$0xff] %vm430, %v442
          $region60: #{tpu_custom_call.1} parent=55 // pred_fallthru
            _
          %s444 = sshra.s32 %s306, 7
          %s445 = sand.u32 %s306, 127
          %s446 = smul.addr %s444, 8
          %s447 = scalar_lea.vmem [#allocation5], %s446
          %v448 = vld [vmem:[%s447] sm:$0xff]
          %v449 = vld [vmem:[%s447 + $0x8] sm:$0xff]
          %v450 = vld [vmem:[#allocation2] sm:$0xff]
          %452 = vset.pattern.permute.xlu0 0
          %453 = vperm.xlu0 %452, %v450
          %v454 = vpop.permute.xlu0 %453
          %v456 = vsub.f32 %v448, %v454
          %v457 = vsub.f32 %v449, %v454
          %v458 = vld [vmem:[#allocation3] sm:$0xff]
          %460 = vset.pattern.permute.xlu0 0
          %461 = vperm.xlu0 %460, %v458
          %v462 = vpop.permute.xlu0 %461
          %v464 = vmul.f32 %v456, %v462
          %v465 = vmul.f32 %v457, %v462
          %v466 = vmax.f32 %v464, 0.0
          %v467 = vmax.f32 %v465, 0.0
          %v468 = vld [vmem:[%s3] sm:$0xff]
          %v469 = vld [vmem:[%s4] sm:$0xff]
          %471 = vset.pattern.permute.xlu0 0
          %472 = vperm.xlu0 %471, %v469
          %v473 = vpop.permute.xlu0 %472
          %vm475 = vcmask 64512
          %v477 = vsel %vm475, %v468, 0
          %479 = vmatpush.msra.mxu0 0.0
          %480 = vmatpush.msra.mxu0 0.0
          %481 = vmatpush.msra.mxu0 0.0
          %482 = vmatpush.msra.mxu0 0.0
          %483 = vmatpush.msra.mxu0 0.0
          %484 = vmatpush.msra.mxu0 0.0
          %485 = vmatpush.msra.mxu0 0.0
          %486 = vmatpush.msra.mxu0 0.0
          %487 = vmatpush.msra.mxu0 0.0
          %488 = vmatpush.msra.mxu0 0.0
          %489 = vmatpush.msra.mxu0 0.0
          %490 = vmatpush.msra.mxu0 0.0
          %491 = vmatpush.msra.mxu0 0.0
          %492 = vmatpush.msra.mxu0 0.0
          %493 = vmatpush.msra.mxu0 0.0
          %494 = vmatpush.msra.mxu0 %v466
          %495 = vmatmul.f32.gmra.mxu0 %v477
          %v496 = vpop.f32.mrf.mxu0
          %v497 = vadd.f32 %v473, %v496
          %498 = vdwg.mxu0
          %499 = vmatpush.msra.mxu0 0.0
          %500 = vmatpush.msra.mxu0 0.0
          %501 = vmatpush.msra.mxu0 0.0
          %502 = vmatpush.msra.mxu0 0.0
          %503 = vmatpush.msra.mxu0 0.0
          %504 = vmatpush.msra.mxu0 0.0
          %505 = vmatpush.msra.mxu0 0.0
          %506 = vmatpush.msra.mxu0 0.0
          %507 = vmatpush.msra.mxu0 0.0
          %508 = vmatpush.msra.mxu0 0.0
          %509 = vmatpush.msra.mxu0 0.0
          %510 = vmatpush.msra.mxu0 0.0
          %511 = vmatpush.msra.mxu0 0.0
          %512 = vmatpush.msra.mxu0 0.0
          %513 = vmatpush.msra.mxu0 0.0
          %514 = vmatpush.msra.mxu0 %v467
          %515 = vmatmul.f32.gmra.mxu0 %v477
          %v516 = vpop.f32.mrf.mxu0
          %v517 = vadd.f32 %v473, %v516
          %518 = vdwg.mxu0
          %s519 = sld [smem:[#allocation6]]
          %vm520 = vcmp.ge.f32.partialorder %v497, 0.0
          %vm521 = vcmp.ge.f32.partialorder %v517, 0.0
          %v522 = vstv %s519
          %v523 = vmul.f32 %v522, %v497
          %v524 = vmul.f32 %v522, %v517
          %v525 = vsel %vm520, %v497, %v523
          %v526 = vsel %vm521, %v517, %v524
          %527 = vst [vmem:[%s289] sm:$0xff] %v525
          %528 = vst [vmem:[%s289 + $0x8] sm:$0xff] %v526
        $region56: #{tpu_custom_call.1} parent=43 // pred_fallthru
          _
        %s529 = sand.u32 %s189, 1
        %s530 = scalar_lea.sflag [#allocation8], %s529
        %s531 = sand.u32 %s189, 1
        %s532 = smul.addr %s531, 16
        %s533 = scalar_lea.vmem [#allocation7], %s532
        // Predicated region
        $region61: #{tpu_custom_call.1} parent=43 // pred_check
          %p534 = pneg %p199
        $region62: #{tpu_custom_call.1} parent=43 // pred_check_branch
          %536 = sbr.rel (%p534) target = $region64
        $region63: #{tpu_custom_call.1} parent=43 // pred_region
          %s537 = smul.u32 %s28, %s27
          %s538 = smul.u32 2, %s537
          %540 = vsyncadd %s530, 0
          %s541 = smul.addr %s26, 2
          %s542 = sadd.s32 %s538, %s541
          %s543 = smul.addr %s542, 8
          %s544 = scalar_lea.hbm %s6, %s543
          %s546 = sshll.u32 %s533, 4
          %s547 = int_to_ptr.vmem [resolvable:$true] %s546
          %s548 = sshll.u32 %s544, 4
          %s549 = int_to_ptr.hbm [resolvable:$true] %s548
          %551 = dma.vmem_to_hbm [thread:$0]  %s547, 256, %s549, %s530
        $region64: #{tpu_custom_call.1} parent=43 // pred_fallthru
          _
      $region44: #{tpu_custom_call.1} parent=5 // pred_fallthru
        _
      %p552 = scmp.le.s32.totalorder 2, %s16
      // Predicated region
      $region65: #{tpu_custom_call.1} parent=5 // pred_check
        %p553 = pneg %p552
      $region66: #{tpu_custom_call.1} parent=5 // pred_check_branch
        %555 = sbr.rel (%p553) target = $region68
      $region67: #{tpu_custom_call.1} parent=5 // pred_region
        %s556 = ssub.s32 %s16, 2
        // Predicated region
        $region69: #{tpu_custom_call.1} parent=67 // pred_check
          %p557 = pneg %p205
        $region70: #{tpu_custom_call.1} parent=67 // pred_check_branch
          %559 = sbr.rel (%p557) target = $region72
        $region71: #{tpu_custom_call.1} parent=67 // pred_region
          %s560 = sand.u32 %s190, 1
          %s561 = scalar_lea.sflag [#allocation8], %s560
          %s562 = sand.u32 %s190, 1
          %s563 = smul.addr %s562, 16
          %s564 = scalar_lea.vmem [#allocation7], %s563
          %566 = dma.done %s561, 256
        $region72: #{tpu_custom_call.1} parent=67 // pred_fallthru
          _
      $region68: #{tpu_custom_call.1} parent=5 // pred_fallthru
        _
    $region6: #{tpu_custom_call.1} parent=1 // loop_footer
      %s20 = sadd.s32 1, %s16
    $region7: #{tpu_custom_call.1} parent=1 // loop_footer_branch
      %15 = sbr.rel target = $region3
    $region8: #{tpu_custom_call.1} parent=1 // loop_exit
      _
    %567 = vsyncpa [#allocation8], 1
    %s568 = scalar_lea.sflag [#allocation8], 1
    %569 = vsyncpa %s568, 1

</llo_original>
